<compile_context>
chip_gen: v5e
topology: v5e:2x2
jax: 0.10.0
libtpu: 0.0.40
codegen_flags: <defaults>
</compile_context>

<pallas_src>
import jax
import jax.numpy as jnp
from jax.experimental import pallas as pl
from jax.experimental.pallas import tpu as pltpu


def _round_up(n, m):
    return ((n + m - 1) // m) * m


def _packed_mlp_kernel(x_ref, w1_ref, b1_ref, w2_ref, b2_ref, z_ref):
    # x_ref:  (tn, p*S)  packed node features (p nodes per row, lane-dense)
    # w1_ref: (p*S, p*H) block-diag first linear       b1_ref: (1, p*H)
    # w2_ref: (p*H, p*Z) block-diag second linear      b2_ref: (1, p*Z)
    # z_ref:  (tn, p*Z)  packed output (reshapes for free to (tn*p, Z))
    h = jnp.dot(x_ref[...], w1_ref[...], preferred_element_type=jnp.float32)
    h = jnp.maximum(h + b1_ref[...], 0.0)          # bias + ReLU (f32 VPU)
    z = jnp.dot(h, w2_ref[...], preferred_element_type=jnp.float32)
    z_ref[...] = (z + b2_ref[...]).astype(z_ref.dtype)


def encoder_forward(x, w1, b1, w2, b2, *, tn_rows=2048,
                    min_pallas_rows=32768, force_pallas=False):
    """x: (B, T, K, S) float32 -> z: (B, T, K, z_size) float32."""
    B, T, K, S = x.shape
    H = w1.shape[1]
    Z = w2.shape[1]
    N = B * T * K

    x2 = x.reshape(N, S)

    # For small/medium problems the pallas_call fixed cost dominates; fused
    # XLA wins there.  Crossover is in the tens-of-thousands-of-rows range.
    if N < min_pallas_rows and not force_pallas:
        h = jnp.maximum(x2 @ w1 + b1, 0.0)
        return (h @ w2 + b2).reshape(B, T, K, Z)

    # Row-packing factor: pack p nodes per packed row so the x tile is
    # lane-dense (p*S == 128 when S divides 128).  Capped at 8 to keep the
    # packed arithmetic intensity (~128 FLOP/byte at S=16,H=32,Z=8) below
    # v5e's ~240 FLOP/byte ridge -> stays firmly HBM-bound everywhere.
    if 0 < S <= 128 and 128 % S == 0:
        p = min(128 // S, 8)
    else:
        p = 1  # unpacked fallback; still correct, just not lane-dense

    pS, pH, pZ = p * S, p * H, p * Z

    Np = pl.cdiv(N, p)  # packed rows needed

    # Packed-row tile: multiple of 8 sublanes, large to amortize the ~0.35 us
    # per-grid-step overhead, and capped so moderate N still yields >= 2 grid
    # blocks (keeps both v7x TensorCores busy under dimension_semantics
    # ("parallel",)).
    tn_eff = min(tn_rows, max(8, _round_up(pl.cdiv(Np, 2), 8)))
    n_blocks = pl.cdiv(Np, tn_eff)
    np_pad = n_blocks * tn_eff
    n_pad = np_pad * p
    if n_pad != N:
        # Padded rows are independent garbage (block-diag weights keep lanes
        # independent); sliced off after the call.
        x2 = jnp.pad(x2, ((0, n_pad - N), (0, 0)))
    xp = x2.reshape(np_pad, pS)  # free row-major reshape, no extra HBM pass

    # One-time packed block-diagonal weights (tiny: 128x256 + 256x64 f32).
    w1p = jnp.kron(jnp.eye(p, dtype=w1.dtype), w1)   # (pS, pH)
    w2p = jnp.kron(jnp.eye(p, dtype=w2.dtype), w2)   # (pH, pZ)
    b1p = jnp.tile(b1, p).reshape(1, pH)
    b2p = jnp.tile(b2, p).reshape(1, pZ)

    flops = 2 * np_pad * (pS * pH + pH * pZ)
    bytes_accessed = 4 * (np_pad * (pS + pZ) + pS * pH + pH + pH * pZ + pZ)

    zp = pl.pallas_call(
        _packed_mlp_kernel,
        out_shape=jax.ShapeDtypeStruct((np_pad, pZ), jnp.float32),
        grid_spec=pl.GridSpec(
            grid=(n_blocks,),
            in_specs=[
                pl.BlockSpec((tn_eff, pS), lambda i: (i, 0)),  # packed x rows
                pl.BlockSpec((pS, pH), lambda i: (0, 0)),      # W1p (resident)
                pl.BlockSpec((1, pH), lambda i: (0, 0)),       # b1p
                pl.BlockSpec((pH, pZ), lambda i: (0, 0)),      # W2p (resident)
                pl.BlockSpec((1, pZ), lambda i: (0, 0)),       # b2p
            ],
            out_specs=pl.BlockSpec((tn_eff, pZ), lambda i: (i, 0)),
        ),
        compiler_params=pltpu.CompilerParams(
            # Independent row blocks -> shard across v7x's 2 TensorCores.
            dimension_semantics=("parallel",),
            # ~6 MiB of double-buffered tiles at tn_rows=2048; 32 MiB is safe
            # on every generation (v7x has only 64 MiB physical VMEM).
            vmem_limit_bytes=32 * 1024 * 1024,
        ),
        cost_estimate=pl.CostEstimate(
            flops=flops, transcendentals=0, bytes_accessed=bytes_accessed),
    )(xp, w1p, b1p, w2p, b2p)

    # (Np_pad, p*Z) -> (n_pad, Z) is a free row-major reshape (no transpose),
    # then slice off the padded rows.
    z2 = zp.reshape(n_pad, Z)[:N]
    return z2.reshape(B, T, K, Z)


def init_params(key, state_size, z_size, hidden_size=32):
    """Deterministic synthetic init (PyTorch-Linear-like uniform fan-in)."""
    k1, k2, k3, k4 = jax.random.split(key, 4)
    lim1 = 1.0 / jnp.sqrt(state_size)
    lim2 = 1.0 / jnp.sqrt(hidden_size)
    w1 = jax.random.uniform(k1, (state_size, hidden_size), jnp.float32, -lim1, lim1)
    b1 = jax.random.uniform(k2, (hidden_size,), jnp.float32, -lim1, lim1)
    w2 = jax.random.uniform(k3, (hidden_size, z_size), jnp.float32, -lim2, lim2)
    b2 = jax.random.uniform(k4, (z_size,), jnp.float32, -lim2, lim2)
    return w1, b1, w2, b2


if __name__ == "__main__":
    # Small shapes consistent with the module: B=2 batches, T=4 timesteps,
    # K=8 nodes, S=16 state features, z_size=8, hidden=32.
    B, T, K, S = 2, 4, 8, 16
    Z_SIZE, HIDDEN = 8, 32

    key = jax.random.PRNGKey(0)
    kx, kp = jax.random.split(key)
    x = jax.random.normal(kx, (B, T, K, S), dtype=jnp.float32)
    w1, b1, w2, b2 = init_params(kp, S, Z_SIZE, HIDDEN)

    # force_pallas=True so the demo exercises the kernel even though N=64 is
    # far below the size threshold where Pallas beats fused XLA.
    z = encoder_forward(x, w1, b1, w2, b2, force_pallas=True)
    jax.block_until_ready(z)

    # Reference check in plain JAX (same math).
    h_ref = jnp.maximum(x.reshape(-1, S) @ w1 + b1, 0.0)
    z_ref = (h_ref @ w2 + b2).reshape(B, T, K, Z_SIZE)
    assert z.shape == (B, T, K, Z_SIZE)
    assert jnp.allclose(z, z_ref, atol=1e-5, rtol=1e-5)

    print("KERNEL_OK")
</pallas_src>

<mosaic_0001>
module attributes {stable_mosaic.version = 11 : i64} {
  func.func @_packed_mlp_kernel(%arg0: i32, %arg1: memref<8x128xf32, #tpu.memory_space<vmem>>, %arg2: memref<128x256xf32, #tpu.memory_space<vmem>>, %arg3: memref<1x256xf32, #tpu.memory_space<vmem>>, %arg4: memref<256x64xf32, #tpu.memory_space<vmem>>, %arg5: memref<1x64xf32, #tpu.memory_space<vmem>>, %arg6: memref<8x64xf32, #tpu.memory_space<vmem>>) attributes {dimension_semantics = [#tpu.dimension_semantics<parallel>], iteration_bounds = array<i64: 1>, scalar_prefetch = 0 : i64, scratch_operands = 0 : i64, tpu.core_type = #tpu.core_type<tc>, window_params = [{transform_indices = @transform_0, window_bounds = array<i64: 8, 128>}, {pipeline_mode = #tpu.pipeline_mode<synchronous>, transform_indices = @transform_1, window_bounds = array<i64: 128, 256>}, {pipeline_mode = #tpu.pipeline_mode<synchronous>, transform_indices = @transform_2, window_bounds = array<i64: 1, 256>}, {pipeline_mode = #tpu.pipeline_mode<synchronous>, transform_indices = @transform_3, window_bounds = array<i64: 256, 64>}, {pipeline_mode = #tpu.pipeline_mode<synchronous>, transform_indices = @transform_4, window_bounds = array<i64: 1, 64>}, {transform_indices = @transform_5, window_bounds = array<i64: 8, 64>}]} {
    %c0 = arith.constant 0 : index
    %c0_0 = arith.constant 0 : index
    %0 = vector.load %arg1[%c0, %c0_0] : memref<8x128xf32, #tpu.memory_space<vmem>>, vector<8x128xf32>
    %c0_1 = arith.constant 0 : index
    %c0_2 = arith.constant 0 : index
    %1 = vector.load %arg2[%c0_1, %c0_2] : memref<128x256xf32, #tpu.memory_space<vmem>>, vector<128x256xf32>
    %cst = arith.constant dense<0.000000e+00> : vector<8x256xf32>
    %2 = tpu.matmul %0, %1, %cst {dimension_numbers = #tpu.dot_dimension_numbers<[1], [0], [0], [1], [0, 0, 1, 1], [], []>} : vector<8x128xf32>, vector<128x256xf32>, vector<8x256xf32> -> vector<8x256xf32>
    %c0_3 = arith.constant 0 : index
    %c0_4 = arith.constant 0 : index
    %3 = vector.load %arg3[%c0_3, %c0_4] : memref<1x256xf32, #tpu.memory_space<vmem>>, vector<1x256xf32>
    %4 = vector.broadcast %3 : vector<1x256xf32> to vector<8x256xf32>
    %5 = arith.addf %2, %4 : vector<8x256xf32>
    %cst_5 = arith.constant 0.000000e+00 : f32
    %6 = vector.broadcast %cst_5 : f32 to vector<8x256xf32>
    %7 = arith.maximumf %5, %6 : vector<8x256xf32>
    %c0_6 = arith.constant 0 : index
    %c0_7 = arith.constant 0 : index
    %8 = vector.load %arg4[%c0_6, %c0_7] : memref<256x64xf32, #tpu.memory_space<vmem>>, vector<256x64xf32>
    %cst_8 = arith.constant dense<0.000000e+00> : vector<8x64xf32>
    %9 = tpu.matmul %7, %8, %cst_8 {dimension_numbers = #tpu.dot_dimension_numbers<[1], [0], [0], [1], [0, 0, 1, 1], [], []>} : vector<8x256xf32>, vector<256x64xf32>, vector<8x64xf32> -> vector<8x64xf32>
    %c0_9 = arith.constant 0 : index
    %c0_10 = arith.constant 0 : index
    %10 = vector.load %arg5[%c0_9, %c0_10] : memref<1x64xf32, #tpu.memory_space<vmem>>, vector<1x64xf32>
    %11 = vector.broadcast %10 : vector<1x64xf32> to vector<8x64xf32>
    %12 = arith.addf %9, %11 : vector<8x64xf32>
    %c0_11 = arith.constant 0 : index
    %c0_12 = arith.constant 0 : index
    %13 = vector.load %arg6[%c0_11, %c0_12] : memref<8x64xf32, #tpu.memory_space<vmem>>, vector<8x64xf32>
    tpu.vector_store %arg6[%c0_11, %c0_12], %12 {strides = array<i32>} : memref<8x64xf32, #tpu.memory_space<vmem>>, vector<8x64xf32>,
    return
  }
  func.func @transform_0(%arg0: i32) -> (i32, i32) {
    %c0_i32 = arith.constant 0 : i32
    %c0_i32_0 = arith.constant 0 : i32
    return %arg0, %c0_i32 : i32, i32
  }
  func.func @transform_1(%arg0: i32) -> (i32, i32) {
    %c0_i32 = arith.constant 0 : i32
    %c0_i32_0 = arith.constant 0 : i32
    %c0_i32_1 = arith.constant 0 : i32
    return %c0_i32, %c0_i32_0 : i32, i32
  }
  func.func @transform_2(%arg0: i32) -> (i32, i32) {
    %c0_i32 = arith.constant 0 : i32
    %c0_i32_0 = arith.constant 0 : i32
    %c0_i32_1 = arith.constant 0 : i32
    return %c0_i32, %c0_i32_0 : i32, i32
  }
  func.func @transform_3(%arg0: i32) -> (i32, i32) {
    %c0_i32 = arith.constant 0 : i32
    %c0_i32_0 = arith.constant 0 : i32
    %c0_i32_1 = arith.constant 0 : i32
    return %c0_i32, %c0_i32_0 : i32, i32
  }
  func.func @transform_4(%arg0: i32) -> (i32, i32) {
    %c0_i32 = arith.constant 0 : i32
    %c0_i32_0 = arith.constant 0 : i32
    %c0_i32_1 = arith.constant 0 : i32
    return %c0_i32, %c0_i32_0 : i32, i32
  }
  func.func @transform_5(%arg0: i32) -> (i32, i32) {
    %c0_i32 = arith.constant 0 : i32
    %c0_i32_0 = arith.constant 0 : i32
    return %arg0, %c0_i32 : i32, i32
  }
}

</mosaic_0001>

<llo_original>
// kernel: tpu_custom_call.1
$region0: #{tpu_custom_call.1}
  #allocation0 [shape = 'u32[]', space=smem, size = 0x4, offset = 0x4, fixed_abs, tag = 'smem constant byte address 0x4 - core index']
  #allocation1 [shape = 'u32[72,128]{1,0:T(1,128)}', space=vmem, size = 0x9000, scoped, tag = 'internal scratch']
  %s0 = inlined_call_operand.vmem [shape: f32[8,128], index: 0, kind: input, shape index: {}]
  %s1 = inlined_call_operand.vmem [shape: f32[128,256], index: 1, kind: input, shape index: {}]
  %s2 = inlined_call_operand.vmem [shape: f32[1,256], index: 2, kind: input, shape index: {}]
  %s3 = inlined_call_operand.vmem [shape: f32[256,64], index: 3, kind: input, shape index: {}]
  %s4 = inlined_call_operand.vmem [shape: f32[1,64], index: 4, kind: input, shape index: {}]
  %s5 = inlined_call_operand.hbm [shape: f32[8,64], index: 5, kind: output, shape index: {}]
  %s6 = sld [smem:[#allocation0]]
  $region30: #{tpu_custom_call.1} parent=0
    _
  %s8 = ssub.s32 1, %s6
  %s9 = scalar_select 0, %s8, %s6
  $region1: #{tpu_custom_call.1} parent=0
    #allocation2 [shape = 'u8[4096]{0}', space=vmem, size = 0x1000, scoped, tag = 'output window, operand 0, single buffered']
    #allocation3 [shape = 's32[1]{0}', space=sflag, size = 0x4, scoped, tag = 'scoped memory for tpu_custom_call.1']
    %10 = vsyncpa [#allocation3], 0
    // Predicated region
    $region2: #{tpu_custom_call.1} parent=1 // pred_check
      _
    $region3: #{tpu_custom_call.1} parent=1 // pred_check_branch
      %12 = sbr.rel (0) target = $region5
    $region4: #{tpu_custom_call.1} parent=1 // pred_region
      _
    $region5: #{tpu_custom_call.1} parent=1 // pred_fallthru
      _
    // Predicated region
    $region6: #{tpu_custom_call.1} parent=1 // pred_check
      _
    $region7: #{tpu_custom_call.1} parent=1 // pred_check_branch
      %14 = sbr.rel (0) target = $region9
    $region8: #{tpu_custom_call.1} parent=1 // pred_region
      _
    $region9: #{tpu_custom_call.1} parent=1 // pred_fallthru
      _
    // Predicated region
    $region10: #{tpu_custom_call.1} parent=1 // pred_check
      _
    $region11: #{tpu_custom_call.1} parent=1 // pred_check_branch
      %16 = sbr.rel (0) target = $region13
    $region12: #{tpu_custom_call.1} parent=1 // pred_region
      _
    $region13: #{tpu_custom_call.1} parent=1 // pred_fallthru
      _
    // Predicated region
    $region14: #{tpu_custom_call.1} parent=1 // pred_check
      _
    $region15: #{tpu_custom_call.1} parent=1 // pred_check_branch
      %18 = sbr.rel (0) target = $region17
    $region16: #{tpu_custom_call.1} parent=1 // pred_region
      _
    $region17: #{tpu_custom_call.1} parent=1 // pred_fallthru
      _
    // Predicated region
    $region18: #{tpu_custom_call.1} parent=1 // pred_check
      _
    $region19: #{tpu_custom_call.1} parent=1 // pred_check_branch
      %20 = sbr.rel (0) target = $region21
    $region20: #{tpu_custom_call.1} parent=1 // pred_region
      _
    $region21: #{tpu_custom_call.1} parent=1 // pred_fallthru
      _
    %v21 = vld [vmem:[%s0] sm:$0xff]
    %v22 = vld [vmem:[%s1] sm:$0xff]
    %v23 = vld [vmem:[%s1 + $0x8] sm:$0xff]
    %v24 = vld [vmem:[%s1 + $0x10] sm:$0xff]
    %v25 = vld [vmem:[%s1 + $0x18] sm:$0xff]
    %v26 = vld [vmem:[%s1 + $0x20] sm:$0xff]
    %v27 = vld [vmem:[%s1 + $0x28] sm:$0xff]
    %v28 = vld [vmem:[%s1 + $0x30] sm:$0xff]
    %v29 = vld [vmem:[%s1 + $0x38] sm:$0xff]
    %v30 = vld [vmem:[%s1 + $0x40] sm:$0xff]
    %v31 = vld [vmem:[%s1 + $0x48] sm:$0xff]
    %v32 = vld [vmem:[%s1 + $0x50] sm:$0xff]
    %v33 = vld [vmem:[%s1 + $0x58] sm:$0xff]
    %v34 = vld [vmem:[%s1 + $0x60] sm:$0xff]
    %v35 = vld [vmem:[%s1 + $0x68] sm:$0xff]
    %v36 = vld [vmem:[%s1 + $0x70] sm:$0xff]
    %v37 = vld [vmem:[%s1 + $0x78] sm:$0xff]
    %v38 = vld [vmem:[%s1 + $0x80] sm:$0xff]
    %v39 = vld [vmem:[%s1 + $0x88] sm:$0xff]
    %v40 = vld [vmem:[%s1 + $0x90] sm:$0xff]
    %v41 = vld [vmem:[%s1 + $0x98] sm:$0xff]
    %v42 = vld [vmem:[%s1 + $0xa0] sm:$0xff]
    %v43 = vld [vmem:[%s1 + $0xa8] sm:$0xff]
    %v44 = vld [vmem:[%s1 + $0xb0] sm:$0xff]
    %v45 = vld [vmem:[%s1 + $0xb8] sm:$0xff]
    %v46 = vld [vmem:[%s1 + $0xc0] sm:$0xff]
    %v47 = vld [vmem:[%s1 + $0xc8] sm:$0xff]
    %v48 = vld [vmem:[%s1 + $0xd0] sm:$0xff]
    %v49 = vld [vmem:[%s1 + $0xd8] sm:$0xff]
    %v50 = vld [vmem:[%s1 + $0xe0] sm:$0xff]
    %v51 = vld [vmem:[%s1 + $0xe8] sm:$0xff]
    %v52 = vld [vmem:[%s1 + $0xf0] sm:$0xff]
    %v53 = vld [vmem:[%s1 + $0xf8] sm:$0xff]
    %v54 = vld [vmem:[%s2] sm:$0x3]
    %v56 = vperm.slane %v54, 0
    %v57 = vperm.slane %v54, 1
    %60 = vmatpush.msra.mxu0 %v52
    %61 = vmatpush.msra.mxu0 %v50
    %62 = vmatpush.msra.mxu0 %v48
    %63 = vmatpush.msra.mxu0 %v46
    %64 = vmatpush.msra.mxu0 %v44
    %65 = vmatpush.msra.mxu0 %v42
    %66 = vmatpush.msra.mxu0 %v40
    %67 = vmatpush.msra.mxu0 %v38
    %68 = vmatpush.msra.mxu0 %v36
    %69 = vmatpush.msra.mxu0 %v34
    %70 = vmatpush.msra.mxu0 %v32
    %71 = vmatpush.msra.mxu0 %v30
    %72 = vmatpush.msra.mxu0 %v28
    %73 = vmatpush.msra.mxu0 %v26
    %74 = vmatpush.msra.mxu0 %v24
    %75 = vmatpush.msra.mxu0 %v22
    %76 = vmatmul.f32.gmra.mxu0 %v21
    %v77 = vpop.f32.mrf.mxu0
    %v78 = vadd.f32 %v56, %v77
    %79 = vdwg.mxu0
    %80 = vmatpush.msra.mxu0 %v53
    %81 = vmatpush.msra.mxu0 %v51
    %82 = vmatpush.msra.mxu0 %v49
    %83 = vmatpush.msra.mxu0 %v47
    %84 = vmatpush.msra.mxu0 %v45
    %85 = vmatpush.msra.mxu0 %v43
    %86 = vmatpush.msra.mxu0 %v41
    %87 = vmatpush.msra.mxu0 %v39
    %88 = vmatpush.msra.mxu0 %v37
    %89 = vmatpush.msra.mxu0 %v35
    %90 = vmatpush.msra.mxu0 %v33
    %91 = vmatpush.msra.mxu0 %v31
    %92 = vmatpush.msra.mxu0 %v29
    %93 = vmatpush.msra.mxu0 %v27
    %94 = vmatpush.msra.mxu0 %v25
    %95 = vmatpush.msra.mxu0 %v23
    %96 = vmatmul.f32.gmra.mxu0 %v21
    %v97 = vpop.f32.mrf.mxu0
    %v98 = vadd.f32 %v57, %v97
    %99 = vdwg.mxu0
    %v100 = vmax.f32 %v78, 0.0
    %v101 = vmax.f32 %v98, 0.0
    %v102 = vld [vmem:[%s3] sm:$0xff]
    %v103 = vld [vmem:[%s3 + $0x8] sm:$0xff]
    %v104 = vld [vmem:[%s3 + $0x10] sm:$0xff]
    %v105 = vld [vmem:[%s3 + $0x18] sm:$0xff]
    %v106 = vld [vmem:[%s3 + $0x20] sm:$0xff]
    %v107 = vld [vmem:[%s3 + $0x28] sm:$0xff]
    %v108 = vld [vmem:[%s3 + $0x30] sm:$0xff]
    %v109 = vld [vmem:[%s3 + $0x38] sm:$0xff]
    %v110 = vld [vmem:[%s3 + $0x40] sm:$0xff]
    %v111 = vld [vmem:[%s3 + $0x48] sm:$0xff]
    %v112 = vld [vmem:[%s3 + $0x50] sm:$0xff]
    %v113 = vld [vmem:[%s3 + $0x58] sm:$0xff]
    %v114 = vld [vmem:[%s3 + $0x60] sm:$0xff]
    %v115 = vld [vmem:[%s3 + $0x68] sm:$0xff]
    %v116 = vld [vmem:[%s3 + $0x70] sm:$0xff]
    %v117 = vld [vmem:[%s3 + $0x78] sm:$0xff]
    %v118 = vld [vmem:[%s3 + $0x80] sm:$0xff]
    %v119 = vld [vmem:[%s3 + $0x88] sm:$0xff]
    %v120 = vld [vmem:[%s3 + $0x90] sm:$0xff]
    %v121 = vld [vmem:[%s3 + $0x98] sm:$0xff]
    %v122 = vld [vmem:[%s3 + $0xa0] sm:$0xff]
    %v123 = vld [vmem:[%s3 + $0xa8] sm:$0xff]
    %v124 = vld [vmem:[%s3 + $0xb0] sm:$0xff]
    %v125 = vld [vmem:[%s3 + $0xb8] sm:$0xff]
    %v126 = vld [vmem:[%s3 + $0xc0] sm:$0xff]
    %v127 = vld [vmem:[%s3 + $0xc8] sm:$0xff]
    %v128 = vld [vmem:[%s3 + $0xd0] sm:$0xff]
    %v129 = vld [vmem:[%s3 + $0xd8] sm:$0xff]
    %v130 = vld [vmem:[%s3 + $0xe0] sm:$0xff]
    %v131 = vld [vmem:[%s3 + $0xe8] sm:$0xff]
    %v132 = vld [vmem:[%s3 + $0xf0] sm:$0xff]
    %v133 = vld [vmem:[%s3 + $0xf8] sm:$0xff]
    %v134 = vld [vmem:[%s4] sm:$0x1]
    %v136 = vperm.slane %v134, 0
    %138 = vmatpush.msra.mxu0 %v117
    %139 = vmatpush.msra.mxu0 %v116
    %140 = vmatpush.msra.mxu0 %v115
    %141 = vmatpush.msra.mxu0 %v114
    %142 = vmatpush.msra.mxu0 %v113
    %143 = vmatpush.msra.mxu0 %v112
    %144 = vmatpush.msra.mxu0 %v111
    %145 = vmatpush.msra.mxu0 %v110
    %146 = vmatpush.msra.mxu0 %v109
    %147 = vmatpush.msra.mxu0 %v108
    %148 = vmatpush.msra.mxu0 %v107
    %149 = vmatpush.msra.mxu0 %v106
    %150 = vmatpush.msra.mxu0 %v105
    %151 = vmatpush.msra.mxu0 %v104
    %152 = vmatpush.msra.mxu0 %v103
    %153 = vmatpush.msra.mxu0 %v102
    %154 = vmatmul.f32.gmra.mxu0 %v100
    %v155 = vpop.f32.mrf.mxu0
    %v156 = vadd.f32 %v136, %v155
    %157 = vdwg.mxu0
    %158 = vmatpush.msra.mxu0 %v133
    %159 = vmatpush.msra.mxu0 %v132
    %160 = vmatpush.msra.mxu0 %v131
    %161 = vmatpush.msra.mxu0 %v130
    %162 = vmatpush.msra.mxu0 %v129
    %163 = vmatpush.msra.mxu0 %v128
    %164 = vmatpush.msra.mxu0 %v127
    %165 = vmatpush.msra.mxu0 %v126
    %166 = vmatpush.msra.mxu0 %v125
    %167 = vmatpush.msra.mxu0 %v124
    %168 = vmatpush.msra.mxu0 %v123
    %169 = vmatpush.msra.mxu0 %v122
    %170 = vmatpush.msra.mxu0 %v121
    %171 = vmatpush.msra.mxu0 %v120
    %172 = vmatpush.msra.mxu0 %v119
    %173 = vmatpush.msra.mxu0 %v118
    %174 = vmatmul.f32.gmra.mxu0 %v101
    %v175 = vpop.f32.mrf.mxu0
    %v176 = vadd.f32 %v156, %v175
    %177 = vdwg.mxu0
    %vm178 = vcmask 523264
    %179 = vst.msk [vmem:[#allocation2] sm:$0xff] %vm178, %v176
    // Predicated region
    $region22: #{tpu_custom_call.1} parent=1 // pred_check
      _
    $region23: #{tpu_custom_call.1} parent=1 // pred_check_branch
      %181 = sbr.rel (0) target = $region25
    $region24: #{tpu_custom_call.1} parent=1 // pred_region
      %183 = vsyncadd [#allocation3], 0
      %s185 = sshll.u32 [#allocation2], 4
      %s186 = int_to_ptr.vmem [resolvable:$true] %s185
      %s187 = sshll.u32 %s5, 4
      %s188 = int_to_ptr.hbm [resolvable:$true] %s187
      %190 = dma.vmem_to_hbm [thread:$0]  %s186, 128, %s188, [#allocation3]
    $region25: #{tpu_custom_call.1} parent=1 // pred_fallthru
      _
    // Predicated region
    $region26: #{tpu_custom_call.1} parent=1 // pred_check
      _
    $region27: #{tpu_custom_call.1} parent=1 // pred_check_branch
      %192 = sbr.rel (0) target = $region29
    $region28: #{tpu_custom_call.1} parent=1 // pred_region
      %194 = dma.done [#allocation3], 128
    $region29: #{tpu_custom_call.1} parent=1 // pred_fallthru
      _
    %195 = vsyncpa [#allocation3], 1

</llo_original>
